<compile_context>
chip_gen: v7x
topology: tpu7x:2x2x1
jax: 0.10.0
libtpu: 0.0.40
codegen_flags: <defaults>
</compile_context>

<pallas_src>
import jax
import jax.numpy as jnp
from jax.experimental import pallas as pl
from jax.experimental.pallas import tpu as pltpu


def _round_up(x: int, m: int) -> int:
    return (x + m - 1) // m * m


def _cdiv(a: int, b: int) -> int:
    return (a + b - 1) // b


def _vmem_capacity_bytes() -> int:
    try:
        return int(pltpu.get_tpu_info().vmem_capacity_bytes)
    except Exception:
        return 64 << 20  # conservative fallback (v7x per-TensorCore)


def _orthogonal(key, rows, cols, gain=1.0, dtype=jnp.float32):
    """Deterministic orthogonal init (mirrors torch.nn.init.orthogonal_)."""
    n = max(rows, cols)
    a = jax.random.normal(key, (n, n), dtype=jnp.float32)
    q, r = jnp.linalg.qr(a)
    s = jnp.sign(jnp.diag(r))
    s = jnp.where(s == 0, 1.0, s)          # guard: sign(0) would zero a column
    q = q * s[None, :]
    return (gain * q[:rows, :cols]).astype(dtype)


# ----------------------------------------------------------------------------
# Kernel
# ----------------------------------------------------------------------------
def _mlp_kernel(x_ref, w1_ref, b1_ref, w2_ref, b2_ref, o_ref, h_ref):
    # x_ref : (tm, Din_p)   caller dtype (cast to compute dtype in-kernel)
    # w1_ref: (Din_p, Dout_p) cdt      b1_ref: (1, Dout_p) f32
    # w2_ref: (Dout_p, tn)   cdt       b2_ref: (1, tn)     f32
    # o_ref : (tm, tn)                 h_ref : (tm, Dout_p) cdt VMEM scratch
    j = pl.program_id(1)

    # Hidden activation only depends on the row tile: compute it once per row
    # tile (first N strip) and reuse it for every output-column strip.
    @pl.when(j == 0)
    def _():
        x = x_ref[...].astype(w1_ref.dtype)
        h = jnp.dot(x, w1_ref[...], preferred_element_type=jnp.float32)
        h = jnp.maximum(h + b1_ref[...], 0.0)           # bias + ReLU in f32 (VPU)
        h_ref[...] = h.astype(h_ref.dtype)

    y = jnp.dot(h_ref[...], w2_ref[...], preferred_element_type=jnp.float32)
    o_ref[...] = (y + b2_ref[...]).astype(o_ref.dtype)


# ----------------------------------------------------------------------------
# Parameter preparation (call ONCE at init, not per forward)
# ----------------------------------------------------------------------------
def prepare_projection_params(w1, b1, w2, b2, *, compute_dtype=None):
    """Pad features to 128-lane multiples and cast to the MXU compute dtype.

    Weights are stored [in_features, out_features] (transpose of nn.Linear's
    [out, in]) so the kernel does plain row-major MXU matmuls.  Default compute
    dtype is bfloat16 for f32 params (valid on v5e/v6e/v7x MXUs); the bias add,
    ReLU and accumulation stay in f32.
    """
    d_in, d_out = w1.shape
    assert w2.shape == (d_out, d_out), "second Linear must be d_out -> d_out"
    if compute_dtype is None:
        compute_dtype = (jnp.bfloat16 if jnp.dtype(w1.dtype) == jnp.float32
                         else w1.dtype)
    cdt = jnp.dtype(compute_dtype)

    d_in_p = _round_up(d_in, 128)
    d_out_p = _round_up(d_out, 128)

    w1_p = jnp.pad(w1.astype(cdt), ((0, d_in_p - d_in), (0, d_out_p - d_out)))
    w2_p = jnp.pad(w2.astype(cdt), ((0, d_out_p - d_out), (0, d_out_p - d_out)))
    b1_p = jnp.pad(b1.astype(jnp.float32), (0, d_out_p - d_out)).reshape(1, d_out_p)
    b2_p = jnp.pad(b2.astype(jnp.float32), (0, d_out_p - d_out)).reshape(1, d_out_p)
    return dict(w1=w1_p, b1=b1_p, w2=w2_p, b2=b2_p, d_in=d_in, d_out=d_out)


# ----------------------------------------------------------------------------
# Forward
# ----------------------------------------------------------------------------
def projection_layer(x, params, *, tm=512):
    """x: [..., d_in] -> [..., d_out].  Fused Linear + ReLU + Linear."""
    w1_p, b1_p, w2_p, b2_p = params["w1"], params["b1"], params["w2"], params["b2"]
    d_in, d_out = params["d_in"], params["d_out"]
    d_in_p, d_out_p = w1_p.shape
    cdt = jnp.dtype(w1_p.dtype)
    out_dtype = x.dtype
    assert x.shape[-1] == d_in

    lead = x.shape[:-1]
    x2d = x.reshape(-1, d_in)
    m = x2d.shape[0]

    x_item = jnp.dtype(x.dtype).itemsize
    out_item = jnp.dtype(out_dtype).itemsize
    min_item = min(x_item, cdt.itemsize, out_item)
    sub = 8 * max(1, 4 // min_item)            # sublane packing multiple

    # Rows: pad only to the sublane multiple (tiny); the row grid uses cdiv so
    # the last tile may be ragged — padded/ragged rows only produce rows that
    # are sliced off, they never pollute valid rows.
    m_pad = _round_up(max(m, 1), sub)
    pad_r, pad_c = m_pad - m, d_in_p - d_in
    if pad_r or pad_c:
        x2d = jnp.pad(x2d, ((0, pad_r), (0, pad_c)))
    # NOTE: x stays in its original dtype; the cast to cdt happens in-kernel.

    # ---------------- tiling -------------------------------------------------
    # Row tile: big slabs feeding the MXU, but keep >=2 row steps when possible
    # so the "parallel" row axis can be sharded across both v7x TensorCores.
    tm_target = tm
    if m_pad > sub:
        tm_target = min(tm_target, _round_up(_cdiv(m_pad, 2), sub))
    tm_eff = max(sub, min(_round_up(tm_target, sub), m_pad))

    vmem_cap = _vmem_capacity_bytes()
    budget = (min(vmem_cap, 128 << 20) * 3) // 4       # ~48 MiB on v7x

    def vmem_need(tm_e, tn_e):
        w2_bufs = 1 if tn_e == d_out_p else 2          # strips are pipelined
        return (2 * tm_e * d_in_p * x_item             # x tiles (double-buffered)
                + d_in_p * d_out_p * cdt.itemsize      # W1 (single-buffered)
                + d_out_p * 4                          # b1 (f32)
                + w2_bufs * (d_out_p * tn_e * cdt.itemsize + tn_e * 4)  # W2/b2
                + 2 * tm_e * tn_e * out_item           # out tiles
                + tm_e * d_out_p * cdt.itemsize        # h scratch
                + tm_e * d_out_p * 4)                  # f32 hidden slab headroom

    # Output-column strips (independent N axis — no accumulator needed).
    tn_eff = d_out_p
    while vmem_need(tm_eff, tn_eff) > budget and tn_eff > 256:
        tn_eff = max(256, _round_up(tn_eff // 2, 256))
    while vmem_need(tm_eff, tn_eff) > budget and tm_eff > sub:
        tm_eff = max(sub, _round_up(tm_eff // 2, sub))

    grid_m = _cdiv(m_pad, tm_eff)
    grid_n = _cdiv(d_out_p, tn_eff)
    need = vmem_need(tm_eff, tn_eff)

    # Always set the scoped-VMEM limit (v5e default is only 16 MiB) but never
    # request more than ~90% of physical VMEM (64 MiB per core on v7x).
    vmem_limit = min(int(vmem_cap * 9 // 10),
                     max(int(need * 5 // 4) + (4 << 20), 32 << 20))

    # Advisory cost estimate for XLA's scheduler.
    flops = 2 * m_pad * d_out_p * (d_in_p + d_out_p)
    w2_reads = grid_m if grid_n > 1 else 1
    bytes_accessed = (m_pad * d_in_p * x_item
                      + d_in_p * d_out_p * cdt.itemsize
                      + w2_reads * d_out_p * d_out_p * cdt.itemsize
                      + 2 * d_out_p * 4
                      + m_pad * d_out_p * out_item)
    cost = pl.CostEstimate(flops=int(flops), transcendentals=0,
                           bytes_accessed=int(bytes_accessed))

    def spec(shape, idx, mode=None):
        if mode is None:
            return pl.BlockSpec(shape, idx)
        return pl.BlockSpec(shape, idx, pipeline_mode=mode)

    const = pl.Buffered(1)                       # never changes across the grid
    w2_mode = const if grid_n == 1 else None     # strips pipeline when tiled

    in_specs = [
        pl.BlockSpec((tm_eff, d_in_p), lambda i, j: (i, 0)),      # x row tile
        spec((d_in_p, d_out_p), lambda i, j: (0, 0), const),      # W1 (resident)
        spec((1, d_out_p), lambda i, j: (0, 0), const),           # b1 (resident)
        spec((d_out_p, tn_eff), lambda i, j: (0, j), w2_mode),    # W2 strip
        spec((1, tn_eff), lambda i, j: (0, j), w2_mode),          # b2 strip
    ]
    out_spec = pl.BlockSpec((tm_eff, tn_eff), lambda i, j: (i, j))

    out2d = pl.pallas_call(
        _mlp_kernel,
        out_shape=jax.ShapeDtypeStruct((m_pad, d_out_p), out_dtype),
        grid_spec=pltpu.PrefetchScalarGridSpec(
            num_scalar_prefetch=0,
            grid=(grid_m, grid_n),
            in_specs=in_specs,
            out_specs=out_spec,
            scratch_shapes=[pltpu.VMEM((tm_eff, d_out_p), cdt)],  # hidden h
        ),
        compiler_params=pltpu.CompilerParams(
            dimension_semantics=("parallel", "arbitrary"),
            vmem_limit_bytes=int(vmem_limit),
        ),
        cost_estimate=cost,
    )(x2d, w1_p, b1_p, w2_p, b2_p)

    if m_pad != m or d_out_p != d_out:
        out2d = out2d[:m, :d_out]
    return out2d.reshape(*lead, d_out)


if __name__ == "__main__":
    # Small shapes consistent with the module's forward: [batch, seq, input_dim]
    batch, seq = 2, 8
    input_dim, output_dim = 32, 64

    key = jax.random.PRNGKey(0)
    kx, k1, k2 = jax.random.split(key, 3)

    x = jax.random.normal(kx, (batch, seq, input_dim), dtype=jnp.float32)

    # layer_init: orthogonal weights (gain=1), zero bias.
    # PyTorch Linear weight is [out, in]; we store the transpose [in, out].
    w1_pt = _orthogonal(k1, output_dim, input_dim)    # [out, in] like nn.Linear
    w2_pt = _orthogonal(k2, output_dim, output_dim)   # [out, out]
    w1 = w1_pt.T                                      # [in, out]
    w2 = w2_pt.T                                      # [out, out]
    b1 = jnp.zeros((output_dim,), dtype=jnp.float32)
    b2 = jnp.zeros((output_dim,), dtype=jnp.float32)

    # Reference in plain JAX (same math as nn.Sequential(Linear, ReLU, Linear)).
    ref = jnp.maximum(x @ w1 + b1, 0.0) @ w2 + b2

    # Exact f32 compute path.
    params_f32 = prepare_projection_params(w1, b1, w2, b2,
                                           compute_dtype=jnp.float32)
    out = jax.block_until_ready(projection_layer(x, params_f32))
    assert out.shape == (batch, seq, output_dim)
    assert jnp.allclose(out, ref, atol=1e-5, rtol=1e-5), "f32 mismatch vs reference"

    # Default compute path: bf16 MXU inputs (v5e/v6e/v7x), f32 accumulation.
    params_bf16 = prepare_projection_params(w1, b1, w2, b2)
    out_bf16 = jax.block_until_ready(projection_layer(x, params_bf16))
    assert out_bf16.shape == (batch, seq, output_dim)
    assert jnp.allclose(out_bf16, ref, atol=2.5e-1, rtol=5e-2), \
        "bf16 mismatch vs reference"

    print("KERNEL_OK")
</pallas_src>

<mosaic_0001>
module attributes {stable_mosaic.version = 11 : i64} {
  func.func @_mlp_kernel(%arg0: i32, %arg1: i32, %arg2: memref<8x128xf32, #tpu.memory_space<vmem>>, %arg3: memref<128x128xf32, #tpu.memory_space<vmem>>, %arg4: memref<1x128xf32, #tpu.memory_space<vmem>>, %arg5: memref<128x128xf32, #tpu.memory_space<vmem>>, %arg6: memref<1x128xf32, #tpu.memory_space<vmem>>, %arg7: memref<8x128xf32, #tpu.memory_space<vmem>>, %arg8: memref<8x128xf32, #tpu.memory_space<vmem>>) attributes {dimension_semantics = [#tpu.dimension_semantics<parallel>, #tpu.dimension_semantics<arbitrary>], iteration_bounds = array<i64: 2, 1>, scalar_prefetch = 0 : i64, scratch_operands = 1 : i64, tpu.core_type = #tpu.core_type<tc>, window_params = [{transform_indices = @transform_0, window_bounds = array<i64: 8, 128>}, {pipeline_mode = #tpu.pipeline_mode<synchronous>, transform_indices = @transform_1, window_bounds = array<i64: 128, 128>}, {pipeline_mode = #tpu.pipeline_mode<synchronous>, transform_indices = @transform_2, window_bounds = array<i64: 1, 128>}, {pipeline_mode = #tpu.pipeline_mode<synchronous>, transform_indices = @transform_3, window_bounds = array<i64: 128, 128>}, {pipeline_mode = #tpu.pipeline_mode<synchronous>, transform_indices = @transform_4, window_bounds = array<i64: 1, 128>}, {transform_indices = @transform_5, window_bounds = array<i64: 8, 128>}]} {
    %c0_i32 = arith.constant 0 : i32
    %0 = arith.cmpi eq, %arg1, %c0_i32 : i32
    %1 = arith.extui %0 : i1 to i32
    %c0_i32_0 = arith.constant 0 : i32
    %2 = arith.cmpi ne, %1, %c0_i32_0 : i32
    scf.if %2 {
      %c0_8 = arith.constant 0 : index
      %c0_9 = arith.constant 0 : index
      %10 = vector.load %arg2[%c0_8, %c0_9] : memref<8x128xf32, #tpu.memory_space<vmem>>, vector<8x128xf32>
      %c0_10 = arith.constant 0 : index
      %c0_11 = arith.constant 0 : index
      %11 = vector.load %arg3[%c0_10, %c0_11] : memref<128x128xf32, #tpu.memory_space<vmem>>, vector<128x128xf32>
      %cst_12 = arith.constant dense<0.000000e+00> : vector<8x128xf32>
      %12 = tpu.matmul %10, %11, %cst_12 {dimension_numbers = #tpu.dot_dimension_numbers<[1], [0], [0], [1], [0, 0, 1, 1], [], []>} : vector<8x128xf32>, vector<128x128xf32>, vector<8x128xf32> -> vector<8x128xf32>
      %c0_13 = arith.constant 0 : index
      %c0_14 = arith.constant 0 : index
      %13 = vector.load %arg4[%c0_13, %c0_14] : memref<1x128xf32, #tpu.memory_space<vmem>>, vector<1x128xf32>
      %14 = vector.broadcast %13 : vector<1x128xf32> to vector<8x128xf32>
      %15 = arith.addf %12, %14 : vector<8x128xf32>
      %cst_15 = arith.constant 0.000000e+00 : f32
      %16 = vector.broadcast %cst_15 : f32 to vector<8x128xf32>
      %17 = arith.maximumf %15, %16 : vector<8x128xf32>
      %c0_16 = arith.constant 0 : index
      %c0_17 = arith.constant 0 : index
      %18 = vector.load %arg8[%c0_16, %c0_17] : memref<8x128xf32, #tpu.memory_space<vmem>>, vector<8x128xf32>
      tpu.vector_store %arg8[%c0_16, %c0_17], %17 {strides = array<i32>} : memref<8x128xf32, #tpu.memory_space<vmem>>, vector<8x128xf32>,
    } else {
    }
    %c0 = arith.constant 0 : index
    %c0_1 = arith.constant 0 : index
    %3 = vector.load %arg8[%c0, %c0_1] : memref<8x128xf32, #tpu.memory_space<vmem>>, vector<8x128xf32>
    %c0_2 = arith.constant 0 : index
    %c0_3 = arith.constant 0 : index
    %4 = vector.load %arg5[%c0_2, %c0_3] : memref<128x128xf32, #tpu.memory_space<vmem>>, vector<128x128xf32>
    %cst = arith.constant dense<0.000000e+00> : vector<8x128xf32>
    %5 = tpu.matmul %3, %4, %cst {dimension_numbers = #tpu.dot_dimension_numbers<[1], [0], [0], [1], [0, 0, 1, 1], [], []>} : vector<8x128xf32>, vector<128x128xf32>, vector<8x128xf32> -> vector<8x128xf32>
    %c0_4 = arith.constant 0 : index
    %c0_5 = arith.constant 0 : index
    %6 = vector.load %arg6[%c0_4, %c0_5] : memref<1x128xf32, #tpu.memory_space<vmem>>, vector<1x128xf32>
    %7 = vector.broadcast %6 : vector<1x128xf32> to vector<8x128xf32>
    %8 = arith.addf %5, %7 : vector<8x128xf32>
    %c0_6 = arith.constant 0 : index
    %c0_7 = arith.constant 0 : index
    %9 = vector.load %arg7[%c0_6, %c0_7] : memref<8x128xf32, #tpu.memory_space<vmem>>, vector<8x128xf32>
    tpu.vector_store %arg7[%c0_6, %c0_7], %8 {strides = array<i32>} : memref<8x128xf32, #tpu.memory_space<vmem>>, vector<8x128xf32>,
    return
  }
  func.func @transform_0(%arg0: i32, %arg1: i32) -> (i32, i32) {
    %c0_i32 = arith.constant 0 : i32
    %c0_i32_0 = arith.constant 0 : i32
    return %arg0, %c0_i32 : i32, i32
  }
  func.func @transform_1(%arg0: i32, %arg1: i32) -> (i32, i32) {
    %c0_i32 = arith.constant 0 : i32
    %c0_i32_0 = arith.constant 0 : i32
    %c0_i32_1 = arith.constant 0 : i32
    return %c0_i32, %c0_i32_0 : i32, i32
  }
  func.func @transform_2(%arg0: i32, %arg1: i32) -> (i32, i32) {
    %c0_i32 = arith.constant 0 : i32
    %c0_i32_0 = arith.constant 0 : i32
    %c0_i32_1 = arith.constant 0 : i32
    return %c0_i32, %c0_i32_0 : i32, i32
  }
  func.func @transform_3(%arg0: i32, %arg1: i32) -> (i32, i32) {
    %c0_i32 = arith.constant 0 : i32
    %c0_i32_0 = arith.constant 0 : i32
    return %c0_i32, %arg1 : i32, i32
  }
  func.func @transform_4(%arg0: i32, %arg1: i32) -> (i32, i32) {
    %c0_i32 = arith.constant 0 : i32
    %c0_i32_0 = arith.constant 0 : i32
    return %c0_i32, %arg1 : i32, i32
  }
  func.func @transform_5(%arg0: i32, %arg1: i32) -> (i32, i32) {
    %c0_i32 = arith.constant 0 : i32
    return %arg0, %arg1 : i32, i32
  }
}

</mosaic_0001>

<llo_original>
// kernel: tpu_custom_call.1
$region0: #{tpu_custom_call.1}
  #allocation0 [shape = 'u32[]', space=smem, size = 0x4, offset = 0x4, fixed_abs, tag = 'smem constant byte address 0x4 - core index']
  #allocation1 [shape = 'u32[144,128]{1,0:T(1,128)}', space=vmem, size = 0x12000, scoped, tag = 'internal scratch']
  #allocation2 [shape = 'f32[8,128]{1,0:T(8,128)}', space=vmem, size = 0x1000, scoped, tag = 'scratch operand']
  %s0 = inlined_call_operand.hbm [shape: f32[16,128], index: 0, kind: input, shape index: {}]
  %s1 = inlined_call_operand.hbm [shape: f32[128,128], index: 1, kind: input, shape index: {}]
  %s2 = inlined_call_operand.vmem [shape: f32[1,128], index: 2, kind: input, shape index: {}]
  %s3 = inlined_call_operand.hbm [shape: f32[128,128], index: 3, kind: input, shape index: {}]
  %s4 = inlined_call_operand.vmem [shape: f32[1,128], index: 4, kind: input, shape index: {}]
  %s5 = inlined_call_operand.hbm [shape: f32[16,128], index: 5, kind: output, shape index: {}]
  %s6 = sld [smem:[#allocation0]]
  $region69: #{tpu_custom_call.1} parent=0
    _
  %s8 = ssub.s32 1, %s6
  %s9 = scalar_select 0, %s8, %s6
  $region1: #{tpu_custom_call.1} parent=0
    #allocation3 [shape = 'u8[8192]{0}', space=vmem, size = 0x2000, scoped, tag = 'input window, operand 0']
    #allocation4 [shape = 's32[2]{0}', space=sflag, size = 0x8, scoped, tag = 'scoped memory for tpu_custom_call.1']
    #allocation5 [shape = 's32[2]{0}', space=sflag, size = 0x8, scoped, tag = 'scoped memory for tpu_custom_call.1']
    #allocation6 [shape = 'u8[65536]{0}', space=vmem, size = 0x10000, scoped, tag = 'input window, operand 1, single buffered']
    #allocation7 [shape = 's32[1]{0}', space=sflag, size = 0x4, scoped, tag = 'scoped memory for tpu_custom_call.1']
    #allocation8 [shape = 'u8[65536]{0}', space=vmem, size = 0x10000, scoped, tag = 'input window, operand 3, single buffered']
    #allocation9 [shape = 'u8[8192]{0}', space=vmem, size = 0x2000, scoped, tag = 'output window, operand 0']
    %10 = vsyncpa [#allocation4], 0
    %s11 = scalar_lea.sflag [#allocation4], 1
    %12 = vsyncpa %s11, 0
    %13 = vsyncpa [#allocation7], 0
    %14 = vsyncpa [#allocation5], 0
    %s15 = scalar_lea.sflag [#allocation5], 1
    %16 = vsyncpa %s15, 0
    loop: start=0, step=1, limit=4
    $region2: #{tpu_custom_call.1} parent=1 // loop_pre_header
      _
    $region3: #{tpu_custom_call.1} parent=1 // loop_header
      %s18 = sphi 0, %s22
      %p19 = scmp.ge.s32.totalorder %s18, 4
      %s25 = sphi 0, %s37
      %s26 = sphi 0, %s33
      %s27 = sphi 0, %s25
      %s28 = sphi 0, %s26
      %s29 = sphi 0, %s27
      %s30 = sphi 0, %s28
      %s40 = sphi 0, %s42
      %s43 = sphi 0, %s40
      %s44 = sphi 0, %s43
      %s60 = sphi 0, %s44
      %s64 = sphi 0, %s64
      %s66 = sphi 0, %s64
      %s67 = sphi 0, %s66
      %s81 = sphi 0, %s67
      %s85 = sphi 0, %s85
      %s87 = sphi 0, %s85
      %s88 = sphi 0, %s87
      %s102 = sphi 0, %s88
      %s108 = sphi 0, %s110
      %s111 = sphi 0, %s108
      %s112 = sphi 0, %s111
      %s128 = sphi 0, %s112
      %s134 = sphi 0, %s136
      %s137 = sphi 0, %s134
      %s138 = sphi 0, %s137
      %s154 = sphi 0, %s138
      %s162 = sphi 0, %s164
      %s165 = sphi 0, %s162
      %s166 = sphi 0, %s165
      %s182 = sphi 0, %s166
    $region4: #{tpu_custom_call.1} parent=1 // loop_header_branch
      %21 = sbr.rel (%p19) target = $region8
    $region5: #{tpu_custom_call.1} parent=1 // loop_body
      %s23 = ssub.s32 %s18, 1
      %s24 = ssub.s32 %s18, 2
      %s31 = sadd.s32 1, %s26
      %p32 = scmp.ge.s32.totalorder %s31, 1
      %s33 = scalar_select %p32, 0, %s31
      %s34 = sadd.s32 1, %s25
      %s35 = scalar_select %p32, %s34, %s25
      %p36 = scmp.ge.s32.totalorder %s35, 2
      %s37 = scalar_select %p36, 0, %s35
      %s38 = ssub.s32 %s25, %s37
      %p39 = scmp.eq.s32.totalorder %s38, 0
      %s41 = sadd.s32 %s40, 1
      %s42 = scalar_select %p39, %s40, %s41
      %p45 = pneg %p39
      %p46 = scmp.eq.s32.totalorder %s18, 1
      %p47 = por %p45, %p46
      %p48 = scmp.ne.s32.totalorder %s40, %s43
      %p49 = scmp.eq.s32.totalorder %s18, 0
      %p50 = por %p48, %p49
      %p51 = scmp.ne.s32.totalorder %s40, %s43
      %p52 = scmp.eq.s32.totalorder %s23, 1
      %p53 = por %p51, %p52
      %p54 = scmp.ne.s32.totalorder %s43, %s44
      %p55 = scmp.eq.s32.totalorder %s23, 0
      %p56 = por %p54, %p55
      %p57 = scmp.ne.s32.totalorder %s43, %s44
      %p58 = scmp.eq.s32.totalorder %s24, 1
      %p59 = por %p57, %p58
      %p61 = scmp.ne.s32.totalorder %s44, %s60
      %p62 = scmp.eq.s32.totalorder %s24, 0
      %p63 = por %p61, %p62
      %s65 = sadd.s32 %s64, 1
      %p68 = scmp.eq.s32.totalorder %s18, 1
      %p69 = scmp.ne.s32.totalorder %s64, %s66
      %p70 = scmp.eq.s32.totalorder %s18, 0
      %p71 = por %p69, %p70
      %p72 = scmp.ne.s32.totalorder %s64, %s66
      %p73 = scmp.eq.s32.totalorder %s23, 1
      %p74 = por %p72, %p73
      %p75 = scmp.ne.s32.totalorder %s66, %s67
      %p76 = scmp.eq.s32.totalorder %s23, 0
      %p77 = por %p75, %p76
      %p78 = scmp.ne.s32.totalorder %s66, %s67
      %p79 = scmp.eq.s32.totalorder %s24, 1
      %p80 = por %p78, %p79
      %p82 = scmp.ne.s32.totalorder %s67, %s81
      %p83 = scmp.eq.s32.totalorder %s24, 0
      %p84 = por %p82, %p83
      %s86 = sadd.s32 %s85, 1
      %p89 = scmp.eq.s32.totalorder %s18, 1
      %p90 = scmp.ne.s32.totalorder %s85, %s87
      %p91 = scmp.eq.s32.totalorder %s18, 0
      %p92 = por %p90, %p91
      %p93 = scmp.ne.s32.totalorder %s85, %s87
      %p94 = scmp.eq.s32.totalorder %s23, 1
      %p95 = por %p93, %p94
      %p96 = scmp.ne.s32.totalorder %s87, %s88
      %p97 = scmp.eq.s32.totalorder %s23, 0
      %p98 = por %p96, %p97
      %p99 = scmp.ne.s32.totalorder %s87, %s88
      %p100 = scmp.eq.s32.totalorder %s24, 1
      %p101 = por %p99, %p100
      %p103 = scmp.ne.s32.totalorder %s88, %s102
      %p104 = scmp.eq.s32.totalorder %s24, 0
      %p105 = por %p103, %p104
      %s106 = ssub.s32 %s26, %s33
      %p107 = scmp.eq.s32.totalorder %s106, 0
      %s109 = sadd.s32 %s108, 1
      %s110 = scalar_select %p107, %s108, %s109
      %p113 = pneg %p107
      %p114 = scmp.eq.s32.totalorder %s18, 1
      %p115 = por %p113, %p114
      %p116 = scmp.ne.s32.totalorder %s108, %s111
      %p117 = scmp.eq.s32.totalorder %s18, 0
      %p118 = por %p116, %p117
      %p119 = scmp.ne.s32.totalorder %s108, %s111
      %p120 = scmp.eq.s32.totalorder %s23, 1
      %p121 = por %p119, %p120
      %p122 = scmp.ne.s32.totalorder %s111, %s112
      %p123 = scmp.eq.s32.totalorder %s23, 0
      %p124 = por %p122, %p123
      %p125 = scmp.ne.s32.totalorder %s111, %s112
      %p126 = scmp.eq.s32.totalorder %s24, 1
      %p127 = por %p125, %p126
      %p129 = scmp.ne.s32.totalorder %s112, %s128
      %p130 = scmp.eq.s32.totalorder %s24, 0
      %p131 = por %p129, %p130
      %s132 = ssub.s32 %s26, %s33
      %p133 = scmp.eq.s32.totalorder %s132, 0
      %s135 = sadd.s32 %s134, 1
      %s136 = scalar_select %p133, %s134, %s135
      %p139 = pneg %p133
      %p140 = scmp.eq.s32.totalorder %s18, 1
      %p141 = por %p139, %p140
      %p142 = scmp.ne.s32.totalorder %s134, %s137
      %p143 = scmp.eq.s32.totalorder %s18, 0
      %p144 = por %p142, %p143
      %p145 = scmp.ne.s32.totalorder %s134, %s137
      %p146 = scmp.eq.s32.totalorder %s23, 1
      %p147 = por %p145, %p146
      %p148 = scmp.ne.s32.totalorder %s137, %s138
      %p149 = scmp.eq.s32.totalorder %s23, 0
      %p150 = por %p148, %p149
      %p151 = scmp.ne.s32.totalorder %s137, %s138
      %p152 = scmp.eq.s32.totalorder %s24, 1
      %p153 = por %p151, %p152
      %p155 = scmp.ne.s32.totalorder %s138, %s154
      %p156 = scmp.eq.s32.totalorder %s24, 0
      %p157 = por %p155, %p156
      %s158 = ssub.s32 %s25, %s37
      %s159 = ssub.s32 %s26, %s33
      %s160 = sor.u32 %s158, %s159
      %p161 = scmp.eq.s32.totalorder %s160, 0
      %s163 = sadd.s32 %s162, 1
      %s164 = scalar_select %p161, %s162, %s163
      %p167 = pneg %p161
      %p168 = scmp.eq.s32.totalorder %s18, 1
      %p169 = por %p167, %p168
      %p170 = scmp.ne.s32.totalorder %s162, %s165
      %p171 = scmp.eq.s32.totalorder %s18, 0
      %p172 = por %p170, %p171
      %p173 = scmp.ne.s32.totalorder %s162, %s165
      %p174 = scmp.eq.s32.totalorder %s23, 1
      %p175 = por %p173, %p174
      %p176 = scmp.ne.s32.totalorder %s165, %s166
      %p177 = scmp.eq.s32.totalorder %s23, 0
      %p178 = por %p176, %p177
      %p179 = scmp.ne.s32.totalorder %s165, %s166
      %p180 = scmp.eq.s32.totalorder %s24, 1
      %p181 = por %p179, %p180
      %p183 = scmp.ne.s32.totalorder %s166, %s182
      %p184 = scmp.eq.s32.totalorder %s24, 0
      %p185 = por %p183, %p184
      %p186 = scmp.le.s32.totalorder 1, %s18
      %p187 = scmp.lt.s32.totalorder %s18, 3
      %p188 = pnand %p186, %p187
      %p189 = pneg %p188
      // Predicated region
      $region9: #{tpu_custom_call.1} parent=5 // pred_check
        _
      $region10: #{tpu_custom_call.1} parent=5 // pred_check_branch
        %191 = sbr.rel (%p188) target = $region12
      $region11: #{tpu_custom_call.1} parent=5 // pred_region
        %s192 = ssub.s32 %s18, 1
        // Predicated region
        $region13: #{tpu_custom_call.1} parent=11 // pred_check
          %p193 = pneg %p77
        $region14: #{tpu_custom_call.1} parent=11 // pred_check_branch
          %195 = sbr.rel (%p193) target = $region16
        $region15: #{tpu_custom_call.1} parent=11 // pred_region
          %s197 = ssub.s32 2048, 2048
          %198 = vsyncadd [#allocation7], %s197
          %s199 = sshll.u32 [#allocation6], 4
          %s200 = int_to_ptr.vmem [resolvable:$true] %s199
          %205 = dma.hbm_to_vmem [thread:$0]  %s1, 2048, %s200, [#allocation7], 128, 128, 8
        $region16: #{tpu_custom_call.1} parent=11 // pred_fallthru
          _
        // Predicated region
        $region17: #{tpu_custom_call.1} parent=11 // pred_check
          %p206 = pneg %p98
        $region18: #{tpu_custom_call.1} parent=11 // pred_check_branch
          %208 = sbr.rel (%p206) target = $region20
        $region19: #{tpu_custom_call.1} parent=11 // pred_region
          _
        $region20: #{tpu_custom_call.1} parent=11 // pred_fallthru
          _
        // Predicated region
        $region21: #{tpu_custom_call.1} parent=11 // pred_check
          %p209 = pneg %p124
        $region22: #{tpu_custom_call.1} parent=11 // pred_check_branch
          %211 = sbr.rel (%p209) target = $region24
        $region23: #{tpu_custom_call.1} parent=11 // pred_region
          %s213 = ssub.s32 2048, 2048
          %214 = vsyncadd [#allocation7], %s213
          %s215 = smul.addr %s28, 128
          %s216 = scalar_lea.hbm %s3, %s215
          %s217 = sshll.u32 [#allocation8], 4
          %s218 = int_to_ptr.vmem [resolvable:$true] %s217
          %223 = dma.hbm_to_vmem [thread:$0]  %s216, 2048, %s218, [#allocation7], 128, 128, 8
        $region24: #{tpu_custom_call.1} parent=11 // pred_fallthru
          _
        // Predicated region
        $region25: #{tpu_custom_call.1} parent=11 // pred_check
          %p224 = pneg %p150
        $region26: #{tpu_custom_call.1} parent=11 // pred_check_branch
          %226 = sbr.rel (%p224) target = $region28
        $region27: #{tpu_custom_call.1} parent=11 // pred_region
          %p227 = scmp.lt.s32.totalorder %s28, 0
          %s228 = scalar_select %p227, %s28, 0
          %s229 = scalar_lea.vmem %s4, %s228
        $region28: #{tpu_custom_call.1} parent=11 // pred_fallthru
          _
      $region12: #{tpu_custom_call.1} parent=5 // pred_fallthru
        _
      %p230 = scmp.lt.s32.totalorder %s18, 2
      // Predicated region
      $region29: #{tpu_custom_call.1} parent=5 // pred_check
        %p231 = pneg %p230
      $region30: #{tpu_custom_call.1} parent=5 // pred_check_branch
        %233 = sbr.rel (%p231) target = $region32
      $region31: #{tpu_custom_call.1} parent=5 // pred_region
        // Predicated region
        $region33: #{tpu_custom_call.1} parent=31 // pred_check
          %p234 = pneg %p50
        $region34: #{tpu_custom_call.1} parent=31 // pred_check_branch
          %236 = sbr.rel (%p234) target = $region36
        $region35: #{tpu_custom_call.1} parent=31 // pred_region
          %s237 = sand.u32 %s40, 1
          %s238 = scalar_lea.sflag [#allocation4], %s237
          %s239 = sand.u32 %s40, 1
          %s240 = smul.addr %s239, 8
          %s241 = scalar_lea.vmem [#allocation3], %s240
          %s243 = ssub.s32 128, 128
          %244 = vsyncadd %s238, %s243
          %s245 = smul.addr %s25, 128
          %s246 = scalar_lea.hbm %s0, %s245
          %s248 = sshll.u32 %s241, 4
          %s249 = int_to_ptr.vmem [resolvable:$true] %s248
          %251 = dma.hbm_to_vmem [thread:$0]  %s246, 128, %s249, %s238
        $region36: #{tpu_custom_call.1} parent=31 // pred_fallthru
          _
      $region32: #{tpu_custom_call.1} parent=5 // pred_fallthru
        _
      %p252 = scmp.le.s32.totalorder 1, %s18
      %p253 = scmp.lt.s32.totalorder %s18, 3
      %p254 = pnand %p252, %p253
      %p255 = pneg %p254
      // Predicated region
      $region37: #{tpu_custom_call.1} parent=5 // pred_check
        _
      $region38: #{tpu_custom_call.1} parent=5 // pred_check_branch
        %257 = sbr.rel (%p254) target = $region40
      $region39: #{tpu_custom_call.1} parent=5 // pred_region
        %s258 = ssub.s32 %s18, 1
        %s259 = sand.u32 %s43, 1
        %s260 = scalar_lea.sflag [#allocation4], %s259
        %s261 = sand.u32 %s43, 1
        %s262 = smul.addr %s261, 8
        %s263 = scalar_lea.vmem [#allocation3], %s262
        // Predicated region
        $region41: #{tpu_custom_call.1} parent=39 // pred_check
          %p264 = pneg %p56
        $region42: #{tpu_custom_call.1} parent=39 // pred_check_branch
          %266 = sbr.rel (%p264) target = $region44
        $region43: #{tpu_custom_call.1} parent=39 // pred_region
          %267 = dma.done %s260, 128
        $region44: #{tpu_custom_call.1} parent=39 // pred_fallthru
          _
        // Predicated region
        $region45: #{tpu_custom_call.1} parent=39 // pred_check
          %p268 = pneg %p77
        $region46: #{tpu_custom_call.1} parent=39 // pred_check_branch
          %270 = sbr.rel (%p268) target = $region48
        $region47: #{tpu_custom_call.1} parent=39 // pred_region
          %271 = dma.done [#allocation7], 2048
        $region48: #{tpu_custom_call.1} parent=39 // pred_fallthru
          _
        // Predicated region
        $region49: #{tpu_custom_call.1} parent=39 // pred_check
          %p272 = pneg %p124
        $region50: #{tpu_custom_call.1} parent=39 // pred_check_branch
          %274 = sbr.rel (%p272) target = $region52
        $region51: #{tpu_custom_call.1} parent=39 // pred_region
          %275 = dma.done [#allocation7], 2048
        $region52: #{tpu_custom_call.1} parent=39 // pred_fallthru
          _
        %s276 = sand.u32 %s43, 1
        %s277 = scalar_lea.sflag [#allocation4], %s276
        %s278 = sand.u32 %s43, 1
        %s279 = smul.addr %s278, 8
        %s280 = scalar_lea.vmem [#allocation3], %s279
        %p281 = pneg %p56
        %p282 = pneg %p53
        %p283 = pneg %p77
        %p284 = pneg %p74
        %p285 = pneg %p98
        %p286 = pneg %p95
        %p287 = pneg %p124
        %p288 = pneg %p121
        %p289 = scmp.lt.s32.totalorder %s28, 0
        %s290 = scalar_select %p289, %s28, 0
        %s291 = scalar_lea.vmem %s4, %s290
        %p292 = pneg %p150
        %p293 = pneg %p147
        %p294 = pneg %p178
        %p295 = pneg %p175
        %s296 = sand.u32 %s165, 1
        %s297 = scalar_lea.sflag [#allocation5], %s296
        %s298 = sand.u32 %s165, 1
        %s299 = smul.addr %s298, 8
        %s300 = scalar_lea.vmem [#allocation9], %s299
        %p301 = scmp.lt.s32.totalorder %s28, 0
        %s302 = scalar_select %p301, %s28, 0
        %s303 = scalar_lea.vmem %s4, %s302
        %p304 = scmp.eq.s32.totalorder %s28, 0
        // Predicated region
        $region53: #{tpu_custom_call.1} parent=39 // pred_check
          %p305 = pneg %p304
        $region54: #{tpu_custom_call.1} parent=39 // pred_check_branch
          %307 = sbr.rel (%p305) target = $region56
        $region55: #{tpu_custom_call.1} parent=39 // pred_region
          %v308 = vld [vmem:[%s263] sm:$0xff]
          %v309 = vld [vmem:[#allocation6] sm:$0xff]
          %v310 = vld [vmem:[#allocation6 + $0x8] sm:$0xff]
          %v311 = vld [vmem:[#allocation6 + $0x10] sm:$0xff]
          %v312 = vld [vmem:[#allocation6 + $0x18] sm:$0xff]
          %v313 = vld [vmem:[#allocation6 + $0x20] sm:$0xff]
          %v314 = vld [vmem:[#allocation6 + $0x28] sm:$0xff]
          %v315 = vld [vmem:[#allocation6 + $0x30] sm:$0xff]
          %v316 = vld [vmem:[#allocation6 + $0x38] sm:$0xff]
          %v317 = vld [vmem:[#allocation6 + $0x40] sm:$0xff]
          %v318 = vld [vmem:[#allocation6 + $0x48] sm:$0xff]
          %v319 = vld [vmem:[#allocation6 + $0x50] sm:$0xff]
          %v320 = vld [vmem:[#allocation6 + $0x58] sm:$0xff]
          %v321 = vld [vmem:[#allocation6 + $0x60] sm:$0xff]
          %v322 = vld [vmem:[#allocation6 + $0x68] sm:$0xff]
          %v323 = vld [vmem:[#allocation6 + $0x70] sm:$0xff]
          %v324 = vld [vmem:[#allocation6 + $0x78] sm:$0xff]
          %v325 = vld [vmem:[%s2] sm:$0x1]
          %v327 = vlaneseq
          %v328 = vshrl.u32 %v327, 7
          %v329 = vsub.s32 0, %v328
          %v330 = vrot.slane %v325, %v329
          %332 = vmatprep.subr.mxu0 0.0
          %333 = vmatpush1.msra.mxu0 %v309
          %334 = vmatprep.subr.mxu0 0.0
          %335 = vmatpush1.msra.mxu0 %v310
          %336 = vmatprep.subr.mxu0 0.0
          %337 = vmatpush1.msra.mxu0 %v311
          %338 = vmatprep.subr.mxu0 0.0
          %339 = vmatpush1.msra.mxu0 %v312
          %340 = vmatprep.subr.mxu0 0.0
          %341 = vmatpush1.msra.mxu0 %v313
          %342 = vmatprep.subr.mxu0 0.0
          %343 = vmatpush1.msra.mxu0 %v314
          %344 = vmatprep.subr.mxu0 0.0
          %345 = vmatpush1.msra.mxu0 %v315
          %346 = vmatprep.subr.mxu0 0.0
          %347 = vmatpush1.msra.mxu0 %v316
          %348 = vmatprep.subr.mxu0 0.0
          %349 = vmatpush1.msra.mxu0 %v317
          %350 = vmatprep.subr.mxu0 0.0
          %351 = vmatpush1.msra.mxu0 %v318
          %352 = vmatprep.subr.mxu0 0.0
          %353 = vmatpush1.msra.mxu0 %v319
          %354 = vmatprep.subr.mxu0 0.0
          %355 = vmatpush1.msra.mxu0 %v320
          %356 = vmatprep.subr.mxu0 0.0
          %357 = vmatpush1.msra.mxu0 %v321
          %358 = vmatprep.subr.mxu0 0.0
          %359 = vmatpush1.msra.mxu0 %v322
          %360 = vmatprep.subr.mxu0 0.0
          %361 = vmatpush1.msra.mxu0 %v323
          %362 = vmatprep.subr.mxu0 0.0
          %363 = vmatpush1.msra.mxu0 %v324
          %364 = vmatprep.subr.mxu0 0.0
          %365 = vmatpush1.msra.mxu0 0.0
          %366 = vmatprep.subr.mxu0 0.0
          %367 = vmatpush1.msra.mxu0 0.0
          %368 = vmatprep.subr.mxu0 0.0
          %369 = vmatpush1.msra.mxu0 0.0
          %370 = vmatprep.subr.mxu0 0.0
          %371 = vmatpush1.msra.mxu0 0.0
          %372 = vmatprep.subr.mxu0 0.0
          %373 = vmatpush1.msra.mxu0 0.0
          %374 = vmatprep.subr.mxu0 0.0
          %375 = vmatpush1.msra.mxu0 0.0
          %376 = vmatprep.subr.mxu0 0.0
          %377 = vmatpush1.msra.mxu0 0.0
          %378 = vmatprep.subr.mxu0 0.0
          %379 = vmatpush1.msra.mxu0 0.0
          %380 = vmatprep.subr.mxu0 0.0
          %381 = vmatpush1.msra.mxu0 0.0
          %382 = vmatprep.subr.mxu0 0.0
          %383 = vmatpush1.msra.mxu0 0.0
          %384 = vmatprep.subr.mxu0 0.0
          %385 = vmatpush1.msra.mxu0 0.0
          %386 = vmatprep.subr.mxu0 0.0
          %387 = vmatpush1.msra.mxu0 0.0
          %388 = vmatprep.subr.mxu0 0.0
          %389 = vmatpush1.msra.mxu0 0.0
          %390 = vmatprep.subr.mxu0 0.0
          %391 = vmatpush1.msra.mxu0 0.0
          %392 = vmatprep.subr.mxu0 0.0
          %393 = vmatpush1.msra.mxu0 0.0
          %394 = vmatprep.subr.mxu0 0.0
          %395 = vmatpush1.msra.mxu0 0.0
          %396 = vmatprep.mubr.f32.mxu0 0.0
          %397 = vmatmul.mubr.f32.gmra.mrb[0].mxu0 %v308
          %v398 = vpop.f32.mrb[0].mxu0
          %v399 = vadd.f32 %v330, %v398
          %v400 = vpop.f32.mrb[0].mxu0
          %401 = vdwg.mxu0
          %v402 = vmax.f32 %v399, 0.0
          %403 = vst [vmem:[#allocation2] sm:$0xff] %v402
        $region56: #{tpu_custom_call.1} parent=39 // pred_fallthru
          _
        %v404 = vld [vmem:[#allocation2] sm:$0xff]
        %v405 = vld [vmem:[#allocation8] sm:$0xff]
        %v406 = vld [vmem:[#allocation8 + $0x8] sm:$0xff]
        %v407 = vld [vmem:[#allocation8 + $0x10] sm:$0xff]
        %v408 = vld [vmem:[#allocation8 + $0x18] sm:$0xff]
        %v409 = vld [vmem:[#allocation8 + $0x20] sm:$0xff]
        %v410 = vld [vmem:[#allocation8 + $0x28] sm:$0xff]
        %v411 = vld [vmem:[#allocation8 + $0x30] sm:$0xff]
        %v412 = vld [vmem:[#allocation8 + $0x38] sm:$0xff]
        %v413 = vld [vmem:[#allocation8 + $0x40] sm:$0xff]
        %v414 = vld [vmem:[#allocation8 + $0x48] sm:$0xff]
        %v415 = vld [vmem:[#allocation8 + $0x50] sm:$0xff]
        %v416 = vld [vmem:[#allocation8 + $0x58] sm:$0xff]
        %v417 = vld [vmem:[#allocation8 + $0x60] sm:$0xff]
        %v418 = vld [vmem:[#allocation8 + $0x68] sm:$0xff]
        %v419 = vld [vmem:[#allocation8 + $0x70] sm:$0xff]
        %v420 = vld [vmem:[#allocation8 + $0x78] sm:$0xff]
        %v421 = vld [vmem:[%s303] sm:$0x1]
        %v423 = vlaneseq
        %v424 = vshrl.u32 %v423, 7
        %v425 = vsub.s32 0, %v424
        %v426 = vrot.slane %v421, %v425
        %428 = vmatprep.subr.mxu0 0.0
        %429 = vmatpush1.msra.mxu0 %v405
        %430 = vmatprep.subr.mxu0 0.0
        %431 = vmatpush1.msra.mxu0 %v406
        %432 = vmatprep.subr.mxu0 0.0
        %433 = vmatpush1.msra.mxu0 %v407
        %434 = vmatprep.subr.mxu0 0.0
        %435 = vmatpush1.msra.mxu0 %v408
        %436 = vmatprep.subr.mxu0 0.0
        %437 = vmatpush1.msra.mxu0 %v409
        %438 = vmatprep.subr.mxu0 0.0
        %439 = vmatpush1.msra.mxu0 %v410
        %440 = vmatprep.subr.mxu0 0.0
        %441 = vmatpush1.msra.mxu0 %v411
        %442 = vmatprep.subr.mxu0 0.0
        %443 = vmatpush1.msra.mxu0 %v412
        %444 = vmatprep.subr.mxu0 0.0
        %445 = vmatpush1.msra.mxu0 %v413
        %446 = vmatprep.subr.mxu0 0.0
        %447 = vmatpush1.msra.mxu0 %v414
        %448 = vmatprep.subr.mxu0 0.0
        %449 = vmatpush1.msra.mxu0 %v415
        %450 = vmatprep.subr.mxu0 0.0
        %451 = vmatpush1.msra.mxu0 %v416
        %452 = vmatprep.subr.mxu0 0.0
        %453 = vmatpush1.msra.mxu0 %v417
        %454 = vmatprep.subr.mxu0 0.0
        %455 = vmatpush1.msra.mxu0 %v418
        %456 = vmatprep.subr.mxu0 0.0
        %457 = vmatpush1.msra.mxu0 %v419
        %458 = vmatprep.subr.mxu0 0.0
        %459 = vmatpush1.msra.mxu0 %v420
        %460 = vmatprep.subr.mxu0 0.0
        %461 = vmatpush1.msra.mxu0 0.0
        %462 = vmatprep.subr.mxu0 0.0
        %463 = vmatpush1.msra.mxu0 0.0
        %464 = vmatprep.subr.mxu0 0.0
        %465 = vmatpush1.msra.mxu0 0.0
        %466 = vmatprep.subr.mxu0 0.0
        %467 = vmatpush1.msra.mxu0 0.0
        %468 = vmatprep.subr.mxu0 0.0
        %469 = vmatpush1.msra.mxu0 0.0
        %470 = vmatprep.subr.mxu0 0.0
        %471 = vmatpush1.msra.mxu0 0.0
        %472 = vmatprep.subr.mxu0 0.0
        %473 = vmatpush1.msra.mxu0 0.0
        %474 = vmatprep.subr.mxu0 0.0
        %475 = vmatpush1.msra.mxu0 0.0
        %476 = vmatprep.subr.mxu0 0.0
        %477 = vmatpush1.msra.mxu0 0.0
        %478 = vmatprep.subr.mxu0 0.0
        %479 = vmatpush1.msra.mxu0 0.0
        %480 = vmatprep.subr.mxu0 0.0
        %481 = vmatpush1.msra.mxu0 0.0
        %482 = vmatprep.subr.mxu0 0.0
        %483 = vmatpush1.msra.mxu0 0.0
        %484 = vmatprep.subr.mxu0 0.0
        %485 = vmatpush1.msra.mxu0 0.0
        %486 = vmatprep.subr.mxu0 0.0
        %487 = vmatpush1.msra.mxu0 0.0
        %488 = vmatprep.subr.mxu0 0.0
        %489 = vmatpush1.msra.mxu0 0.0
        %490 = vmatprep.subr.mxu0 0.0
        %491 = vmatpush1.msra.mxu0 0.0
        %492 = vmatprep.mubr.f32.mxu0 0.0
        %493 = vmatmul.mubr.f32.gmra.mrb[0].mxu0 %v404
        %v494 = vpop.f32.mrb[0].mxu0
        %v495 = vadd.f32 %v426, %v494
        %v496 = vpop.f32.mrb[0].mxu0
        %497 = vdwg.mxu0
        %498 = vst [vmem:[%s300] sm:$0xff] %v495
        %s499 = sand.u32 %s165, 1
        %s500 = scalar_lea.sflag [#allocation5], %s499
        %s501 = sand.u32 %s165, 1
        %s502 = smul.addr %s501, 8
        %s503 = scalar_lea.vmem [#allocation9], %s502
        // Predicated region
        $region57: #{tpu_custom_call.1} parent=39 // pred_check
          %p504 = pneg %p175
        $region58: #{tpu_custom_call.1} parent=39 // pred_check_branch
          %506 = sbr.rel (%p504) target = $region60
        $region59: #{tpu_custom_call.1} parent=39 // pred_region
          %s508 = ssub.s32 128, 128
          %509 = vsyncadd %s500, %s508
          %s510 = sadd.s32 %s28, %s27
          %s511 = smul.addr %s510, 128
          %s512 = scalar_lea.hbm %s5, %s511
          %s514 = sshll.u32 %s503, 4
          %s515 = int_to_ptr.vmem [resolvable:$true] %s514
          %517 = dma.vmem_to_hbm [thread:$0]  %s515, 128, %s512, %s500
        $region60: #{tpu_custom_call.1} parent=39 // pred_fallthru
          _
      $region40: #{tpu_custom_call.1} parent=5 // pred_fallthru
        _
      %p518 = scmp.le.s32.totalorder 2, %s18
      // Predicated region
      $region61: #{tpu_custom_call.1} parent=5 // pred_check
        %p519 = pneg %p518
      $region62: #{tpu_custom_call.1} parent=5 // pred_check_branch
        %521 = sbr.rel (%p519) target = $region64
      $region63: #{tpu_custom_call.1} parent=5 // pred_region
        %s522 = ssub.s32 %s18, 2
        // Predicated region
        $region65: #{tpu_custom_call.1} parent=63 // pred_check
          %p523 = pneg %p181
        $region66: #{tpu_custom_call.1} parent=63 // pred_check_branch
          %525 = sbr.rel (%p523) target = $region68
        $region67: #{tpu_custom_call.1} parent=63 // pred_region
          %s526 = sand.u32 %s166, 1
          %s527 = scalar_lea.sflag [#allocation5], %s526
          %s528 = sand.u32 %s166, 1
          %s529 = smul.addr %s528, 8
          %s530 = scalar_lea.vmem [#allocation9], %s529
          %531 = dma.done %s527, 128
        $region68: #{tpu_custom_call.1} parent=63 // pred_fallthru
          _
      $region64: #{tpu_custom_call.1} parent=5 // pred_fallthru
        _
    $region6: #{tpu_custom_call.1} parent=1 // loop_footer
      %s22 = sadd.s32 1, %s18
    $region7: #{tpu_custom_call.1} parent=1 // loop_footer_branch
      %17 = sbr.rel target = $region3
    $region8: #{tpu_custom_call.1} parent=1 // loop_exit
      _
    %532 = vsyncpa [#allocation4], 1
    %s533 = scalar_lea.sflag [#allocation4], 1
    %534 = vsyncpa %s533, 1
    %535 = vsyncpa [#allocation7], 1
    %536 = vsyncpa [#allocation5], 1
    %s537 = scalar_lea.sflag [#allocation5], 1
    %538 = vsyncpa %s537, 1

</llo_original>
